<compile_context>
chip_gen: v5e
topology: v5e:2x2
jax: 0.10.0
libtpu: 0.0.40
codegen_flags: <defaults>
</compile_context>

<pallas_src>
import jax
import jax.numpy as jnp
from jax.experimental import pallas as pl
from jax.experimental.pallas import tpu as pltpu

LANES = 128   # lane-padded width for hidden(100) / latent(8) / output(2) dims
DEC_OFF = 8   # decoder output occupies lanes [8, 10) of the merged output slab


def autoencoder_kernel(x_ref, w1_ref, bias_ref, wpack_ref, out_ref):
    """Fused encoder+decoder on one batch tile.

    x_ref     : (bb, 2)        f32   input batch tile
    w1_ref    : (2, 128)       f32   layer-1 weight, lane padded
    bias_ref  : (8, 128)       f32   all biases, lane padded (row i = layer i+1)
    wpack_ref : (7, 128, 128)  bf16  layers 2..8 weights, zero padded
    out_ref   : (bb, 128)      f32   merged output: enc lanes 0..7, dec lanes 8..9
    """
    x = x_ref[...]
    bias = bias_ref[...]

    # ---- Layer 1: Linear(2,100)+ReLU.  K=2 -> VPU broadcast-FMA (no MXU push).
    h = (x[:, 0:1] * w1_ref[0:1, :] +
         x[:, 1:2] * w1_ref[1:2, :] +
         bias[0:1, :])
    h = jnp.maximum(h, 0.0)

    def dense(a, idx, relu):
        # bf16 operands, f32 MXU accumulation, f32 bias add.
        acc = jnp.dot(a.astype(jnp.bfloat16), wpack_ref[idx],
                      preferred_element_type=jnp.float32)
        acc = acc + bias[idx + 1:idx + 2, :]
        return jnp.maximum(acc, 0.0) if relu else acc

    # ---- Encoder tail
    h = dense(h, 0, True)        # Linear(100,100) + ReLU
    h = dense(h, 1, True)        # Linear(100,100) + ReLU
    enc = dense(h, 2, False)     # Linear(100,8)   -> real values in lanes 0..7

    # ---- Decoder
    h = dense(enc, 3, True)      # Linear(8,100)   + ReLU
    h = dense(h, 4, True)        # Linear(100,100) + ReLU
    h = dense(h, 5, True)        # Linear(100,100) + ReLU
    dec = dense(h, 6, False)     # Linear(100,2)   -> real values in lanes 8..9

    # enc (lanes 0..7) and dec (lanes 8..9) are disjoint and exactly zero
    # elsewhere, so a plain add produces one lane-dense merged store.
    out_ref[...] = enc + dec


def _round_up(n, m):
    return ((n + m - 1) // m) * m


def _pad_2d(a, rows, cols, col_off=0):
    out = jnp.zeros((rows, cols), a.dtype)
    return out.at[:a.shape[0], col_off:col_off + a.shape[1]].set(a)


def pack_params(params):
    """params: 8 (W, b) pairs, W:(in,out), b:(1,out), in PyTorch layer order."""
    assert len(params) == 8
    w1, _ = params[0]
    w_first = _pad_2d(w1, 2, LANES).astype(jnp.float32)                 # (2,128) f32

    col_offs = [0, 0, 0, 0, 0, 0, 0, DEC_OFF]   # last layer shifted to lanes 8..9
    biases, wpack = [], []
    for i, (w, b) in enumerate(params):
        biases.append(_pad_2d(b, 1, LANES, col_offs[i]).astype(jnp.float32))
        if i > 0:
            wpack.append(_pad_2d(w, LANES, LANES, col_offs[i]).astype(jnp.bfloat16))
    bias_pack = jnp.concatenate(biases, axis=0)                         # (8,128)     f32
    w_pack = jnp.stack(wpack, axis=0)                                   # (7,128,128) bf16
    return w_first, bias_pack, w_pack


def autoencoder_forward(x, params, *, block_b=1024):
    """x: (B, 2) float32. Returns (encoded (B, 8), decoded (B, 2))."""
    B, din = x.shape
    assert din == 2 and block_b >= 8

    w_first, bias_pack, w_pack = pack_params(params)

    # --- batch tiling: even tiles, padding waste < 8 rows per tile, and >= 2
    #     grid steps (when B permits) so v7x megacore uses both TensorCores.
    B8 = _round_up(B, 8)
    nsteps = pl.cdiv(B8, block_b)
    if B8 >= 16:
        nsteps = max(nsteps, 2)
    block_b_eff = _round_up(pl.cdiv(B8, nsteps), 8)
    grid_steps = pl.cdiv(B8, block_b_eff)
    B_pad = grid_steps * block_b_eff
    if B_pad != B:
        x = jnp.pad(x, ((0, B_pad - B), (0, 0)))   # zero rows -> deterministic pad output

    out = pl.pallas_call(
        autoencoder_kernel,
        grid=(grid_steps,),
        in_specs=[
            pl.BlockSpec((block_b_eff, 2), lambda i: (i, 0)),       # x, batch-tiled
            pl.BlockSpec((2, LANES), lambda i: (0, 0)),             # w_first (grid-invariant)
            pl.BlockSpec((8, LANES), lambda i: (0, 0)),             # bias_pack
            pl.BlockSpec((7, LANES, LANES), lambda i: (0, 0, 0)),   # w_pack
        ],
        out_specs=pl.BlockSpec((block_b_eff, LANES), lambda i: (i, 0)),
        out_shape=jax.ShapeDtypeStruct((B_pad, LANES), jnp.float32),
        compiler_params=pltpu.CompilerParams(
            dimension_semantics=("parallel",)),
    )(x, w_first, bias_pack, w_pack)

    # Slice batch padding + lane padding away outside the kernel.
    return out[:B, :8], out[:B, DEC_OFF:DEC_OFF + 2]


def init_params(key):
    """PyTorch-Linear-style init: U(-1/sqrt(fan_in), +1/sqrt(fan_in))."""
    layer_dims = [(2, 100), (100, 100), (100, 100), (100, 8),   # encoder
                  (8, 100), (100, 100), (100, 100), (100, 2)]   # decoder
    params = []
    for (din, dout) in layer_dims:
        key, kw, kb = jax.random.split(key, 3)
        bound = 1.0 / float(din) ** 0.5
        w = jax.random.uniform(kw, (din, dout), jnp.float32, -bound, bound)
        b = jax.random.uniform(kb, (1, dout), jnp.float32, -bound, bound)
        params.append((w, b))
    return params


def reference_forward(x, params):
    """Pure-JAX fp32 reference matching the PyTorch forward pass."""
    h = x
    for i, (w, b) in enumerate(params[:4]):
        h = h @ w + b
        if i < 3:
            h = jnp.maximum(h, 0.0)
    enc = h
    h = enc
    for i, (w, b) in enumerate(params[4:]):
        h = h @ w + b
        if i < 3:
            h = jnp.maximum(h, 0.0)
    return enc, h


if __name__ == "__main__":
    key = jax.random.PRNGKey(0)
    k_params, k_x1, k_x2 = jax.random.split(key, 3)
    params = init_params(k_params)

    # bf16 matmuls with f32 accumulation -> compare against the fp32 reference
    # with relaxed tolerance (numerics intentionally differ slightly from fp32).
    TOL = dict(atol=5e-2, rtol=5e-2)

    # Small batch: exercises the single-tile path.
    x_small = jax.random.normal(k_x1, (8, 2), dtype=jnp.float32)
    enc, dec = jax.block_until_ready(autoencoder_forward(x_small, params))
    enc_ref, dec_ref = reference_forward(x_small, params)
    assert enc.shape == (8, 8) and dec.shape == (8, 2)
    assert jnp.allclose(enc, enc_ref, **TOL)
    assert jnp.allclose(dec, dec_ref, **TOL)

    # Non-multiple batch: exercises even-split 2-step grid + ragged padding path.
    x_big = jax.random.normal(k_x2, (260, 2), dtype=jnp.float32)
    enc2, dec2 = jax.block_until_ready(autoencoder_forward(x_big, params))
    enc2_ref, dec2_ref = reference_forward(x_big, params)
    assert enc2.shape == (260, 8) and dec2.shape == (260, 2)
    assert jnp.allclose(enc2, enc2_ref, **TOL)
    assert jnp.allclose(dec2, dec2_ref, **TOL)

    print("KERNEL_OK")
</pallas_src>

<mosaic_0001>
module attributes {stable_mosaic.version = 11 : i64} {
  func.func @autoencoder_kernel(%arg0: i32, %arg1: memref<8x2xf32, #tpu.memory_space<vmem>>, %arg2: memref<2x128xf32, #tpu.memory_space<vmem>>, %arg3: memref<8x128xf32, #tpu.memory_space<vmem>>, %arg4: memref<7x128x128xbf16, #tpu.memory_space<vmem>>, %arg5: memref<8x128xf32, #tpu.memory_space<vmem>>) attributes {dimension_semantics = [#tpu.dimension_semantics<parallel>], iteration_bounds = array<i64: 1>, scalar_prefetch = 0 : i64, scratch_operands = 0 : i64, tpu.core_type = #tpu.core_type<tc>, window_params = [{transform_indices = @transform_0, window_bounds = array<i64: 8, 2>}, {pipeline_mode = #tpu.pipeline_mode<synchronous>, transform_indices = @transform_1, window_bounds = array<i64: 2, 128>}, {pipeline_mode = #tpu.pipeline_mode<synchronous>, transform_indices = @transform_2, window_bounds = array<i64: 8, 128>}, {pipeline_mode = #tpu.pipeline_mode<synchronous>, transform_indices = @transform_3, window_bounds = array<i64: 7, 128, 128>}, {transform_indices = @transform_4, window_bounds = array<i64: 8, 128>}]} {
    %c0 = arith.constant 0 : index
    %c0_0 = arith.constant 0 : index
    %0 = vector.load %arg1[%c0, %c0_0] : memref<8x2xf32, #tpu.memory_space<vmem>>, vector<8x2xf32>
    %c0_1 = arith.constant 0 : index
    %c0_2 = arith.constant 0 : index
    %1 = vector.load %arg3[%c0_1, %c0_2] : memref<8x128xf32, #tpu.memory_space<vmem>>, vector<8x128xf32>
    %2 = vector.extract_strided_slice %0 {offsets = [0, 0], sizes = [8, 1], strides = [1, 1]} : vector<8x2xf32> to vector<8x1xf32>
    %c0_3 = arith.constant 0 : index
    %c0_4 = arith.constant 0 : index
    %3 = vector.load %arg2[%c0_3, %c0_4] : memref<2x128xf32, #tpu.memory_space<vmem>>, vector<1x128xf32>
    %4 = vector.broadcast %2 : vector<8x1xf32> to vector<8x128xf32>
    %5 = vector.broadcast %3 : vector<1x128xf32> to vector<8x128xf32>
    %6 = arith.mulf %4, %5 : vector<8x128xf32>
    %7 = vector.extract_strided_slice %0 {offsets = [0, 1], sizes = [8, 1], strides = [1, 1]} : vector<8x2xf32> to vector<8x1xf32>
    %c1 = arith.constant 1 : index
    %c0_5 = arith.constant 0 : index
    %8 = vector.load %arg2[%c1, %c0_5] : memref<2x128xf32, #tpu.memory_space<vmem>>, vector<1x128xf32>
    %9 = vector.broadcast %7 : vector<8x1xf32> to vector<8x128xf32>
    %10 = vector.broadcast %8 : vector<1x128xf32> to vector<8x128xf32>
    %11 = arith.mulf %9, %10 : vector<8x128xf32>
    %12 = arith.addf %6, %11 : vector<8x128xf32>
    %13 = vector.extract_strided_slice %1 {offsets = [0, 0], sizes = [1, 128], strides = [1, 1]} : vector<8x128xf32> to vector<1x128xf32>
    %14 = vector.broadcast %13 : vector<1x128xf32> to vector<8x128xf32>
    %15 = arith.addf %12, %14 : vector<8x128xf32>
    %cst = arith.constant 0.000000e+00 : f32
    %16 = vector.broadcast %cst : f32 to vector<8x128xf32>
    %17 = arith.maximumf %15, %16 : vector<8x128xf32>
    %18 = arith.truncf %17 : vector<8x128xf32> to vector<8x128xbf16>
    %c0_6 = arith.constant 0 : index
    %c0_7 = arith.constant 0 : index
    %c0_8 = arith.constant 0 : index
    %19 = vector.load %arg4[%c0_6, %c0_7, %c0_8] : memref<7x128x128xbf16, #tpu.memory_space<vmem>>, vector<1x128x128xbf16>
    %20 = vector.shape_cast %19 : vector<1x128x128xbf16> to vector<128x128xbf16>
    %cst_9 = arith.constant dense<0.000000e+00> : vector<8x128xf32>
    %21 = tpu.matmul %18, %20, %cst_9 {dimension_numbers = #tpu.dot_dimension_numbers<[1], [0], [0], [1], [0, 0, 1, 1], [], []>} : vector<8x128xbf16>, vector<128x128xbf16>, vector<8x128xf32> -> vector<8x128xf32>
    %22 = vector.extract_strided_slice %1 {offsets = [1, 0], sizes = [1, 128], strides = [1, 1]} : vector<8x128xf32> to vector<1x128xf32>
    %23 = vector.broadcast %22 : vector<1x128xf32> to vector<8x128xf32>
    %24 = arith.addf %21, %23 : vector<8x128xf32>
    %cst_10 = arith.constant 0.000000e+00 : f32
    %25 = vector.broadcast %cst_10 : f32 to vector<8x128xf32>
    %26 = arith.maximumf %24, %25 : vector<8x128xf32>
    %27 = arith.truncf %26 : vector<8x128xf32> to vector<8x128xbf16>
    %c1_11 = arith.constant 1 : index
    %c0_12 = arith.constant 0 : index
    %c0_13 = arith.constant 0 : index
    %28 = vector.load %arg4[%c1_11, %c0_12, %c0_13] : memref<7x128x128xbf16, #tpu.memory_space<vmem>>, vector<1x128x128xbf16>
    %29 = vector.shape_cast %28 : vector<1x128x128xbf16> to vector<128x128xbf16>
    %cst_14 = arith.constant dense<0.000000e+00> : vector<8x128xf32>
    %30 = tpu.matmul %27, %29, %cst_14 {dimension_numbers = #tpu.dot_dimension_numbers<[1], [0], [0], [1], [0, 0, 1, 1], [], []>} : vector<8x128xbf16>, vector<128x128xbf16>, vector<8x128xf32> -> vector<8x128xf32>
    %31 = vector.extract_strided_slice %1 {offsets = [2, 0], sizes = [1, 128], strides = [1, 1]} : vector<8x128xf32> to vector<1x128xf32>
    %32 = vector.broadcast %31 : vector<1x128xf32> to vector<8x128xf32>
    %33 = arith.addf %30, %32 : vector<8x128xf32>
    %cst_15 = arith.constant 0.000000e+00 : f32
    %34 = vector.broadcast %cst_15 : f32 to vector<8x128xf32>
    %35 = arith.maximumf %33, %34 : vector<8x128xf32>
    %36 = arith.truncf %35 : vector<8x128xf32> to vector<8x128xbf16>
    %c2 = arith.constant 2 : index
    %c0_16 = arith.constant 0 : index
    %c0_17 = arith.constant 0 : index
    %37 = vector.load %arg4[%c2, %c0_16, %c0_17] : memref<7x128x128xbf16, #tpu.memory_space<vmem>>, vector<1x128x128xbf16>
    %38 = vector.shape_cast %37 : vector<1x128x128xbf16> to vector<128x128xbf16>
    %cst_18 = arith.constant dense<0.000000e+00> : vector<8x128xf32>
    %39 = tpu.matmul %36, %38, %cst_18 {dimension_numbers = #tpu.dot_dimension_numbers<[1], [0], [0], [1], [0, 0, 1, 1], [], []>} : vector<8x128xbf16>, vector<128x128xbf16>, vector<8x128xf32> -> vector<8x128xf32>
    %40 = vector.extract_strided_slice %1 {offsets = [3, 0], sizes = [1, 128], strides = [1, 1]} : vector<8x128xf32> to vector<1x128xf32>
    %41 = vector.broadcast %40 : vector<1x128xf32> to vector<8x128xf32>
    %42 = arith.addf %39, %41 : vector<8x128xf32>
    %43 = arith.truncf %42 : vector<8x128xf32> to vector<8x128xbf16>
    %c3 = arith.constant 3 : index
    %c0_19 = arith.constant 0 : index
    %c0_20 = arith.constant 0 : index
    %44 = vector.load %arg4[%c3, %c0_19, %c0_20] : memref<7x128x128xbf16, #tpu.memory_space<vmem>>, vector<1x128x128xbf16>
    %45 = vector.shape_cast %44 : vector<1x128x128xbf16> to vector<128x128xbf16>
    %cst_21 = arith.constant dense<0.000000e+00> : vector<8x128xf32>
    %46 = tpu.matmul %43, %45, %cst_21 {dimension_numbers = #tpu.dot_dimension_numbers<[1], [0], [0], [1], [0, 0, 1, 1], [], []>} : vector<8x128xbf16>, vector<128x128xbf16>, vector<8x128xf32> -> vector<8x128xf32>
    %47 = vector.extract_strided_slice %1 {offsets = [4, 0], sizes = [1, 128], strides = [1, 1]} : vector<8x128xf32> to vector<1x128xf32>
    %48 = vector.broadcast %47 : vector<1x128xf32> to vector<8x128xf32>
    %49 = arith.addf %46, %48 : vector<8x128xf32>
    %cst_22 = arith.constant 0.000000e+00 : f32
    %50 = vector.broadcast %cst_22 : f32 to vector<8x128xf32>
    %51 = arith.maximumf %49, %50 : vector<8x128xf32>
    %52 = arith.truncf %51 : vector<8x128xf32> to vector<8x128xbf16>
    %c4 = arith.constant 4 : index
    %c0_23 = arith.constant 0 : index
    %c0_24 = arith.constant 0 : index
    %53 = vector.load %arg4[%c4, %c0_23, %c0_24] : memref<7x128x128xbf16, #tpu.memory_space<vmem>>, vector<1x128x128xbf16>
    %54 = vector.shape_cast %53 : vector<1x128x128xbf16> to vector<128x128xbf16>
    %cst_25 = arith.constant dense<0.000000e+00> : vector<8x128xf32>
    %55 = tpu.matmul %52, %54, %cst_25 {dimension_numbers = #tpu.dot_dimension_numbers<[1], [0], [0], [1], [0, 0, 1, 1], [], []>} : vector<8x128xbf16>, vector<128x128xbf16>, vector<8x128xf32> -> vector<8x128xf32>
    %56 = vector.extract_strided_slice %1 {offsets = [5, 0], sizes = [1, 128], strides = [1, 1]} : vector<8x128xf32> to vector<1x128xf32>
    %57 = vector.broadcast %56 : vector<1x128xf32> to vector<8x128xf32>
    %58 = arith.addf %55, %57 : vector<8x128xf32>
    %cst_26 = arith.constant 0.000000e+00 : f32
    %59 = vector.broadcast %cst_26 : f32 to vector<8x128xf32>
    %60 = arith.maximumf %58, %59 : vector<8x128xf32>
    %61 = arith.truncf %60 : vector<8x128xf32> to vector<8x128xbf16>
    %c5 = arith.constant 5 : index
    %c0_27 = arith.constant 0 : index
    %c0_28 = arith.constant 0 : index
    %62 = vector.load %arg4[%c5, %c0_27, %c0_28] : memref<7x128x128xbf16, #tpu.memory_space<vmem>>, vector<1x128x128xbf16>
    %63 = vector.shape_cast %62 : vector<1x128x128xbf16> to vector<128x128xbf16>
    %cst_29 = arith.constant dense<0.000000e+00> : vector<8x128xf32>
    %64 = tpu.matmul %61, %63, %cst_29 {dimension_numbers = #tpu.dot_dimension_numbers<[1], [0], [0], [1], [0, 0, 1, 1], [], []>} : vector<8x128xbf16>, vector<128x128xbf16>, vector<8x128xf32> -> vector<8x128xf32>
    %65 = vector.extract_strided_slice %1 {offsets = [6, 0], sizes = [1, 128], strides = [1, 1]} : vector<8x128xf32> to vector<1x128xf32>
    %66 = vector.broadcast %65 : vector<1x128xf32> to vector<8x128xf32>
    %67 = arith.addf %64, %66 : vector<8x128xf32>
    %cst_30 = arith.constant 0.000000e+00 : f32
    %68 = vector.broadcast %cst_30 : f32 to vector<8x128xf32>
    %69 = arith.maximumf %67, %68 : vector<8x128xf32>
    %70 = arith.truncf %69 : vector<8x128xf32> to vector<8x128xbf16>
    %c6 = arith.constant 6 : index
    %c0_31 = arith.constant 0 : index
    %c0_32 = arith.constant 0 : index
    %71 = vector.load %arg4[%c6, %c0_31, %c0_32] : memref<7x128x128xbf16, #tpu.memory_space<vmem>>, vector<1x128x128xbf16>
    %72 = vector.shape_cast %71 : vector<1x128x128xbf16> to vector<128x128xbf16>
    %cst_33 = arith.constant dense<0.000000e+00> : vector<8x128xf32>
    %73 = tpu.matmul %70, %72, %cst_33 {dimension_numbers = #tpu.dot_dimension_numbers<[1], [0], [0], [1], [0, 0, 1, 1], [], []>} : vector<8x128xbf16>, vector<128x128xbf16>, vector<8x128xf32> -> vector<8x128xf32>
    %74 = vector.extract_strided_slice %1 {offsets = [7, 0], sizes = [1, 128], strides = [1, 1]} : vector<8x128xf32> to vector<1x128xf32>
    %75 = vector.broadcast %74 : vector<1x128xf32> to vector<8x128xf32>
    %76 = arith.addf %73, %75 : vector<8x128xf32>
    %77 = arith.addf %42, %76 : vector<8x128xf32>
    %c0_34 = arith.constant 0 : index
    %c0_35 = arith.constant 0 : index
    %78 = vector.load %arg5[%c0_34, %c0_35] : memref<8x128xf32, #tpu.memory_space<vmem>>, vector<8x128xf32>
    tpu.vector_store %arg5[%c0_34, %c0_35], %77 {strides = array<i32>} : memref<8x128xf32, #tpu.memory_space<vmem>>, vector<8x128xf32>,
    return
  }
  func.func @transform_0(%arg0: i32) -> (i32, i32) {
    %c0_i32 = arith.constant 0 : i32
    %c0_i32_0 = arith.constant 0 : i32
    return %arg0, %c0_i32 : i32, i32
  }
  func.func @transform_1(%arg0: i32) -> (i32, i32) {
    %c0_i32 = arith.constant 0 : i32
    %c0_i32_0 = arith.constant 0 : i32
    %c0_i32_1 = arith.constant 0 : i32
    return %c0_i32, %c0_i32_0 : i32, i32
  }
  func.func @transform_2(%arg0: i32) -> (i32, i32) {
    %c0_i32 = arith.constant 0 : i32
    %c0_i32_0 = arith.constant 0 : i32
    %c0_i32_1 = arith.constant 0 : i32
    return %c0_i32, %c0_i32_0 : i32, i32
  }
  func.func @transform_3(%arg0: i32) -> (i32, i32, i32) {
    %c0_i32 = arith.constant 0 : i32
    %c0_i32_0 = arith.constant 0 : i32
    %c0_i32_1 = arith.constant 0 : i32
    %c0_i32_2 = arith.constant 0 : i32
    return %c0_i32, %c0_i32_0, %c0_i32_1 : i32, i32, i32
  }
  func.func @transform_4(%arg0: i32) -> (i32, i32) {
    %c0_i32 = arith.constant 0 : i32
    %c0_i32_0 = arith.constant 0 : i32
    return %arg0, %c0_i32 : i32, i32
  }
}

</mosaic_0001>

<llo_original>
// kernel: tpu_custom_call.1
$region0: #{tpu_custom_call.1}
  #allocation0 [shape = 'u32[]', space=smem, size = 0x4, offset = 0x4, fixed_abs, tag = 'smem constant byte address 0x4 - core index']
  #allocation1 [shape = 'u32[72,128]{1,0:T(1,128)}', space=vmem, size = 0x9000, scoped, tag = 'internal scratch']
  %s0 = inlined_call_operand.vmem [shape: f32[8,2], index: 0, kind: input, shape index: {}]
  %s1 = inlined_call_operand.vmem [shape: f32[2,128], index: 1, kind: input, shape index: {}]
  %s2 = inlined_call_operand.vmem [shape: f32[8,128], index: 2, kind: input, shape index: {}]
  %s3 = inlined_call_operand.hbm [shape: bf16[7,128,128], index: 3, kind: input, shape index: {}]
  %s4 = inlined_call_operand.hbm [shape: f32[8,128], index: 4, kind: output, shape index: {}]
  %s5 = sld [smem:[#allocation0]]
  $region30: #{tpu_custom_call.1} parent=0
    _
  %s7 = ssub.s32 1, %s5
  %s8 = scalar_select 0, %s7, %s5
  $region1: #{tpu_custom_call.1} parent=0
    #allocation2 [shape = 'u8[229376]{0}', space=vmem, size = 0x38000, scoped, tag = 'input window, operand 3, single buffered']
    #allocation3 [shape = 's32[1]{0}', space=sflag, size = 0x4, scoped, tag = 'scoped memory for tpu_custom_call.1']
    #allocation4 [shape = 's32[1]{0}', space=sflag, size = 0x4, scoped, tag = 'scoped memory for tpu_custom_call.1']
    #allocation5 [shape = 'u8[4096]{0}', space=vmem, size = 0x1000, scoped, tag = 'output window, operand 0, single buffered']
    %9 = vsyncpa [#allocation3], 0
    %10 = vsyncpa [#allocation4], 0
    // Predicated region
    $region2: #{tpu_custom_call.1} parent=1 // pred_check
      _
    $region3: #{tpu_custom_call.1} parent=1 // pred_check_branch
      %12 = sbr.rel (0) target = $region5
    $region4: #{tpu_custom_call.1} parent=1 // pred_region
      _
    $region5: #{tpu_custom_call.1} parent=1 // pred_fallthru
      _
    // Predicated region
    $region6: #{tpu_custom_call.1} parent=1 // pred_check
      _
    $region7: #{tpu_custom_call.1} parent=1 // pred_check_branch
      %14 = sbr.rel (0) target = $region9
    $region8: #{tpu_custom_call.1} parent=1 // pred_region
      _
    $region9: #{tpu_custom_call.1} parent=1 // pred_fallthru
      _
    // Predicated region
    $region10: #{tpu_custom_call.1} parent=1 // pred_check
      _
    $region11: #{tpu_custom_call.1} parent=1 // pred_check_branch
      %16 = sbr.rel (0) target = $region13
    $region12: #{tpu_custom_call.1} parent=1 // pred_region
      _
    $region13: #{tpu_custom_call.1} parent=1 // pred_fallthru
      _
    // Predicated region
    $region14: #{tpu_custom_call.1} parent=1 // pred_check
      _
    $region15: #{tpu_custom_call.1} parent=1 // pred_check_branch
      %18 = sbr.rel (0) target = $region17
    $region16: #{tpu_custom_call.1} parent=1 // pred_region
      %20 = vsyncadd [#allocation3], 0
      %s21 = sshll.u32 %s3, 4
      %s22 = int_to_ptr.hbm [resolvable:$true] %s21
      %s23 = sshll.u32 [#allocation2], 4
      %s24 = int_to_ptr.vmem [resolvable:$true] %s23
      %29 = dma.hbm_to_vmem [thread:$0]  %s22, 7168, %s24, [#allocation3], 64, 64, 4
    $region17: #{tpu_custom_call.1} parent=1 // pred_fallthru
      _
    // Predicated region
    $region18: #{tpu_custom_call.1} parent=1 // pred_check
      _
    $region19: #{tpu_custom_call.1} parent=1 // pred_check_branch
      %31 = sbr.rel (0) target = $region21
    $region20: #{tpu_custom_call.1} parent=1 // pred_region
      %33 = dma.done [#allocation3], 7168
    $region21: #{tpu_custom_call.1} parent=1 // pred_fallthru
      _
    %v34 = vld [vmem:[%s0] sm:$0xff]
    %v35 = vld [vmem:[%s2] sm:$0xff]
    %v36 = vld [vmem:[%s1] sm:$0x1]
    %38 = vset.pattern.permute.xlu0 0
    %39 = vperm.xlu0 %38, %v34
    %v40 = vpop.permute.xlu0 %39
    %v42 = vperm.slane %v36, 0
    %v43 = vmul.f32 %v40, %v42
    %v44 = vld [vmem:[%s1 + $0x1] sm:$0x1]
    %45 = vset.pattern.permute.xlu0 1
    %46 = vperm.xlu0 %45, %v34
    %v47 = vpop.permute.xlu0 %46
    %v49 = vperm.slane %v44, 0
    %v50 = vmul.f32 %v47, %v49
    %v51 = vadd.f32 %v43, %v50
    %v52 = vperm.slane %v35, 0
    %v53 = vadd.f32 %v51, %v52
    %v54 = vmax.f32 %v53, 0.0
    %v55 = vpack.c.bf16 %v54, %v54
    %v56 = vld [vmem:[#allocation2] sm:$0xf]
    %v57 = vld [vmem:[#allocation2 + $0x4] sm:$0xf]
    %v58 = vld [vmem:[#allocation2 + $0x8] sm:$0xf]
    %v59 = vld [vmem:[#allocation2 + $0xc] sm:$0xf]
    %v60 = vld [vmem:[#allocation2 + $0x10] sm:$0xf]
    %v61 = vld [vmem:[#allocation2 + $0x14] sm:$0xf]
    %v62 = vld [vmem:[#allocation2 + $0x18] sm:$0xf]
    %v63 = vld [vmem:[#allocation2 + $0x1c] sm:$0xf]
    %v64 = vld [vmem:[#allocation2 + $0x20] sm:$0xf]
    %v65 = vld [vmem:[#allocation2 + $0x24] sm:$0xf]
    %v66 = vld [vmem:[#allocation2 + $0x28] sm:$0xf]
    %v67 = vld [vmem:[#allocation2 + $0x2c] sm:$0xf]
    %v68 = vld [vmem:[#allocation2 + $0x30] sm:$0xf]
    %v69 = vld [vmem:[#allocation2 + $0x34] sm:$0xf]
    %v70 = vld [vmem:[#allocation2 + $0x38] sm:$0xf]
    %v71 = vld [vmem:[#allocation2 + $0x3c] sm:$0xf]
    %v72 = vperm.slane %v35, 1
    %v89 = vunpack.c.l.b16 %v56
    %v90 = vunpack.c.l.b16 %v57
    %v91 = vunpack.c.l.b16 %v58
    %v92 = vunpack.c.l.b16 %v59
    %v93 = vunpack.c.l.b16 %v60
    %v94 = vunpack.c.l.b16 %v61
    %v95 = vunpack.c.l.b16 %v62
    %v96 = vunpack.c.l.b16 %v63
    %v97 = vunpack.c.l.b16 %v64
    %v98 = vunpack.c.l.b16 %v65
    %v99 = vunpack.c.l.b16 %v66
    %v100 = vunpack.c.l.b16 %v67
    %v101 = vunpack.c.l.b16 %v68
    %v102 = vunpack.c.l.b16 %v69
    %v103 = vunpack.c.l.b16 %v70
    %v104 = vunpack.c.l.b16 %v71
    %v105 = vpack.c.b16 %v90, %v89
    %v106 = vpack.c.b16 %v92, %v91
    %v107 = vpack.c.b16 %v94, %v93
    %v108 = vpack.c.b16 %v96, %v95
    %v109 = vpack.c.b16 %v98, %v97
    %v110 = vpack.c.b16 %v100, %v99
    %v111 = vpack.c.b16 %v102, %v101
    %v112 = vpack.c.b16 %v104, %v103
    %121 = vmatpush.bf16.msra.mxu0 %v112
    %122 = vmatpush.bf16.msra.mxu0 %v111
    %123 = vmatpush.bf16.msra.mxu0 %v110
    %124 = vmatpush.bf16.msra.mxu0 %v109
    %125 = vmatpush.bf16.msra.mxu0 %v108
    %126 = vmatpush.bf16.msra.mxu0 %v107
    %127 = vmatpush.bf16.msra.mxu0 %v106
    %128 = vmatpush.bf16.msra.mxu0 %v105
    %129 = vmatmul.bf16.gmra.mxu0 %v55
    %v130 = vpop.f32.mrf.mxu0
    %v131 = vadd.f32 %v72, %v130
    %v132 = vpop.f32.mrf.mxu0
    %133 = vdwg.mxu0
    %v134 = vmax.f32 %v131, 0.0
    %v135 = vpack.c.bf16 %v134, %v134
    %s136 = scalar_lea.vmem [#allocation2], 64
    %v137 = vld [vmem:[%s136] sm:$0xf]
    %v138 = vld [vmem:[%s136 + $0x4] sm:$0xf]
    %v139 = vld [vmem:[%s136 + $0x8] sm:$0xf]
    %v140 = vld [vmem:[%s136 + $0xc] sm:$0xf]
    %v141 = vld [vmem:[%s136 + $0x10] sm:$0xf]
    %v142 = vld [vmem:[%s136 + $0x14] sm:$0xf]
    %v143 = vld [vmem:[%s136 + $0x18] sm:$0xf]
    %v144 = vld [vmem:[%s136 + $0x1c] sm:$0xf]
    %v145 = vld [vmem:[%s136 + $0x20] sm:$0xf]
    %v146 = vld [vmem:[%s136 + $0x24] sm:$0xf]
    %v147 = vld [vmem:[%s136 + $0x28] sm:$0xf]
    %v148 = vld [vmem:[%s136 + $0x2c] sm:$0xf]
    %v149 = vld [vmem:[%s136 + $0x30] sm:$0xf]
    %v150 = vld [vmem:[%s136 + $0x34] sm:$0xf]
    %v151 = vld [vmem:[%s136 + $0x38] sm:$0xf]
    %v152 = vld [vmem:[%s136 + $0x3c] sm:$0xf]
    %v153 = vperm.slane %v35, 2
    %v170 = vunpack.c.l.b16 %v137
    %v171 = vunpack.c.l.b16 %v138
    %v172 = vunpack.c.l.b16 %v139
    %v173 = vunpack.c.l.b16 %v140
    %v174 = vunpack.c.l.b16 %v141
    %v175 = vunpack.c.l.b16 %v142
    %v176 = vunpack.c.l.b16 %v143
    %v177 = vunpack.c.l.b16 %v144
    %v178 = vunpack.c.l.b16 %v145
    %v179 = vunpack.c.l.b16 %v146
    %v180 = vunpack.c.l.b16 %v147
    %v181 = vunpack.c.l.b16 %v148
    %v182 = vunpack.c.l.b16 %v149
    %v183 = vunpack.c.l.b16 %v150
    %v184 = vunpack.c.l.b16 %v151
    %v185 = vunpack.c.l.b16 %v152
    %v186 = vpack.c.b16 %v171, %v170
    %v187 = vpack.c.b16 %v173, %v172
    %v188 = vpack.c.b16 %v175, %v174
    %v189 = vpack.c.b16 %v177, %v176
    %v190 = vpack.c.b16 %v179, %v178
    %v191 = vpack.c.b16 %v181, %v180
    %v192 = vpack.c.b16 %v183, %v182
    %v193 = vpack.c.b16 %v185, %v184
    %202 = vmatpush.bf16.msra.mxu0 %v193
    %203 = vmatpush.bf16.msra.mxu0 %v192
    %204 = vmatpush.bf16.msra.mxu0 %v191
    %205 = vmatpush.bf16.msra.mxu0 %v190
    %206 = vmatpush.bf16.msra.mxu0 %v189
    %207 = vmatpush.bf16.msra.mxu0 %v188
    %208 = vmatpush.bf16.msra.mxu0 %v187
    %209 = vmatpush.bf16.msra.mxu0 %v186
    %210 = vmatmul.bf16.gmra.mxu0 %v135
    %v211 = vpop.f32.mrf.mxu0
    %v212 = vadd.f32 %v153, %v211
    %v213 = vpop.f32.mrf.mxu0
    %214 = vdwg.mxu0
    %v215 = vmax.f32 %v212, 0.0
    %v216 = vpack.c.bf16 %v215, %v215
    %s217 = scalar_lea.vmem [#allocation2], 128
    %v218 = vld [vmem:[%s217] sm:$0xf]
    %v219 = vld [vmem:[%s217 + $0x4] sm:$0xf]
    %v220 = vld [vmem:[%s217 + $0x8] sm:$0xf]
    %v221 = vld [vmem:[%s217 + $0xc] sm:$0xf]
    %v222 = vld [vmem:[%s217 + $0x10] sm:$0xf]
    %v223 = vld [vmem:[%s217 + $0x14] sm:$0xf]
    %v224 = vld [vmem:[%s217 + $0x18] sm:$0xf]
    %v225 = vld [vmem:[%s217 + $0x1c] sm:$0xf]
    %v226 = vld [vmem:[%s217 + $0x20] sm:$0xf]
    %v227 = vld [vmem:[%s217 + $0x24] sm:$0xf]
    %v228 = vld [vmem:[%s217 + $0x28] sm:$0xf]
    %v229 = vld [vmem:[%s217 + $0x2c] sm:$0xf]
    %v230 = vld [vmem:[%s217 + $0x30] sm:$0xf]
    %v231 = vld [vmem:[%s217 + $0x34] sm:$0xf]
    %v232 = vld [vmem:[%s217 + $0x38] sm:$0xf]
    %v233 = vld [vmem:[%s217 + $0x3c] sm:$0xf]
    %v234 = vperm.slane %v35, 3
    %v251 = vunpack.c.l.b16 %v218
    %v252 = vunpack.c.l.b16 %v219
    %v253 = vunpack.c.l.b16 %v220
    %v254 = vunpack.c.l.b16 %v221
    %v255 = vunpack.c.l.b16 %v222
    %v256 = vunpack.c.l.b16 %v223
    %v257 = vunpack.c.l.b16 %v224
    %v258 = vunpack.c.l.b16 %v225
    %v259 = vunpack.c.l.b16 %v226
    %v260 = vunpack.c.l.b16 %v227
    %v261 = vunpack.c.l.b16 %v228
    %v262 = vunpack.c.l.b16 %v229
    %v263 = vunpack.c.l.b16 %v230
    %v264 = vunpack.c.l.b16 %v231
    %v265 = vunpack.c.l.b16 %v232
    %v266 = vunpack.c.l.b16 %v233
    %v267 = vpack.c.b16 %v252, %v251
    %v268 = vpack.c.b16 %v254, %v253
    %v269 = vpack.c.b16 %v256, %v255
    %v270 = vpack.c.b16 %v258, %v257
    %v271 = vpack.c.b16 %v260, %v259
    %v272 = vpack.c.b16 %v262, %v261
    %v273 = vpack.c.b16 %v264, %v263
    %v274 = vpack.c.b16 %v266, %v265
    %283 = vmatpush.bf16.msra.mxu0 %v274
    %284 = vmatpush.bf16.msra.mxu0 %v273
    %285 = vmatpush.bf16.msra.mxu0 %v272
    %286 = vmatpush.bf16.msra.mxu0 %v271
    %287 = vmatpush.bf16.msra.mxu0 %v270
    %288 = vmatpush.bf16.msra.mxu0 %v269
    %289 = vmatpush.bf16.msra.mxu0 %v268
    %290 = vmatpush.bf16.msra.mxu0 %v267
    %291 = vmatmul.bf16.gmra.mxu0 %v216
    %v292 = vpop.f32.mrf.mxu0
    %v293 = vadd.f32 %v234, %v292
    %v294 = vpop.f32.mrf.mxu0
    %295 = vdwg.mxu0
    %v296 = vpack.c.bf16 %v293, %v293
    %s297 = scalar_lea.vmem [#allocation2], 192
    %v298 = vld [vmem:[%s297] sm:$0xf]
    %v299 = vld [vmem:[%s297 + $0x4] sm:$0xf]
    %v300 = vld [vmem:[%s297 + $0x8] sm:$0xf]
    %v301 = vld [vmem:[%s297 + $0xc] sm:$0xf]
    %v302 = vld [vmem:[%s297 + $0x10] sm:$0xf]
    %v303 = vld [vmem:[%s297 + $0x14] sm:$0xf]
    %v304 = vld [vmem:[%s297 + $0x18] sm:$0xf]
    %v305 = vld [vmem:[%s297 + $0x1c] sm:$0xf]
    %v306 = vld [vmem:[%s297 + $0x20] sm:$0xf]
    %v307 = vld [vmem:[%s297 + $0x24] sm:$0xf]
    %v308 = vld [vmem:[%s297 + $0x28] sm:$0xf]
    %v309 = vld [vmem:[%s297 + $0x2c] sm:$0xf]
    %v310 = vld [vmem:[%s297 + $0x30] sm:$0xf]
    %v311 = vld [vmem:[%s297 + $0x34] sm:$0xf]
    %v312 = vld [vmem:[%s297 + $0x38] sm:$0xf]
    %v313 = vld [vmem:[%s297 + $0x3c] sm:$0xf]
    %v314 = vperm.slane %v35, 4
    %v331 = vunpack.c.l.b16 %v298
    %v332 = vunpack.c.l.b16 %v299
    %v333 = vunpack.c.l.b16 %v300
    %v334 = vunpack.c.l.b16 %v301
    %v335 = vunpack.c.l.b16 %v302
    %v336 = vunpack.c.l.b16 %v303
    %v337 = vunpack.c.l.b16 %v304
    %v338 = vunpack.c.l.b16 %v305
    %v339 = vunpack.c.l.b16 %v306
    %v340 = vunpack.c.l.b16 %v307
    %v341 = vunpack.c.l.b16 %v308
    %v342 = vunpack.c.l.b16 %v309
    %v343 = vunpack.c.l.b16 %v310
    %v344 = vunpack.c.l.b16 %v311
    %v345 = vunpack.c.l.b16 %v312
    %v346 = vunpack.c.l.b16 %v313
    %v347 = vpack.c.b16 %v332, %v331
    %v348 = vpack.c.b16 %v334, %v333
    %v349 = vpack.c.b16 %v336, %v335
    %v350 = vpack.c.b16 %v338, %v337
    %v351 = vpack.c.b16 %v340, %v339
    %v352 = vpack.c.b16 %v342, %v341
    %v353 = vpack.c.b16 %v344, %v343
    %v354 = vpack.c.b16 %v346, %v345
    %363 = vmatpush.bf16.msra.mxu0 %v354
    %364 = vmatpush.bf16.msra.mxu0 %v353
    %365 = vmatpush.bf16.msra.mxu0 %v352
    %366 = vmatpush.bf16.msra.mxu0 %v351
    %367 = vmatpush.bf16.msra.mxu0 %v350
    %368 = vmatpush.bf16.msra.mxu0 %v349
    %369 = vmatpush.bf16.msra.mxu0 %v348
    %370 = vmatpush.bf16.msra.mxu0 %v347
    %371 = vmatmul.bf16.gmra.mxu0 %v296
    %v372 = vpop.f32.mrf.mxu0
    %v373 = vadd.f32 %v314, %v372
    %v374 = vpop.f32.mrf.mxu0
    %375 = vdwg.mxu0
    %v376 = vmax.f32 %v373, 0.0
    %v377 = vpack.c.bf16 %v376, %v376
    %s378 = scalar_lea.vmem [#allocation2], 256
    %v379 = vld [vmem:[%s378] sm:$0xf]
    %v380 = vld [vmem:[%s378 + $0x4] sm:$0xf]
    %v381 = vld [vmem:[%s378 + $0x8] sm:$0xf]
    %v382 = vld [vmem:[%s378 + $0xc] sm:$0xf]
    %v383 = vld [vmem:[%s378 + $0x10] sm:$0xf]
    %v384 = vld [vmem:[%s378 + $0x14] sm:$0xf]
    %v385 = vld [vmem:[%s378 + $0x18] sm:$0xf]
    %v386 = vld [vmem:[%s378 + $0x1c] sm:$0xf]
    %v387 = vld [vmem:[%s378 + $0x20] sm:$0xf]
    %v388 = vld [vmem:[%s378 + $0x24] sm:$0xf]
    %v389 = vld [vmem:[%s378 + $0x28] sm:$0xf]
    %v390 = vld [vmem:[%s378 + $0x2c] sm:$0xf]
    %v391 = vld [vmem:[%s378 + $0x30] sm:$0xf]
    %v392 = vld [vmem:[%s378 + $0x34] sm:$0xf]
    %v393 = vld [vmem:[%s378 + $0x38] sm:$0xf]
    %v394 = vld [vmem:[%s378 + $0x3c] sm:$0xf]
    %v395 = vperm.slane %v35, 5
    %v412 = vunpack.c.l.b16 %v379
    %v413 = vunpack.c.l.b16 %v380
    %v414 = vunpack.c.l.b16 %v381
    %v415 = vunpack.c.l.b16 %v382
    %v416 = vunpack.c.l.b16 %v383
    %v417 = vunpack.c.l.b16 %v384
    %v418 = vunpack.c.l.b16 %v385
    %v419 = vunpack.c.l.b16 %v386
    %v420 = vunpack.c.l.b16 %v387
    %v421 = vunpack.c.l.b16 %v388
    %v422 = vunpack.c.l.b16 %v389
    %v423 = vunpack.c.l.b16 %v390
    %v424 = vunpack.c.l.b16 %v391
    %v425 = vunpack.c.l.b16 %v392
    %v426 = vunpack.c.l.b16 %v393
    %v427 = vunpack.c.l.b16 %v394
    %v428 = vpack.c.b16 %v413, %v412
    %v429 = vpack.c.b16 %v415, %v414
    %v430 = vpack.c.b16 %v417, %v416
    %v431 = vpack.c.b16 %v419, %v418
    %v432 = vpack.c.b16 %v421, %v420
    %v433 = vpack.c.b16 %v423, %v422
    %v434 = vpack.c.b16 %v425, %v424
    %v435 = vpack.c.b16 %v427, %v426
    %444 = vmatpush.bf16.msra.mxu0 %v435
    %445 = vmatpush.bf16.msra.mxu0 %v434
    %446 = vmatpush.bf16.msra.mxu0 %v433
    %447 = vmatpush.bf16.msra.mxu0 %v432
    %448 = vmatpush.bf16.msra.mxu0 %v431
    %449 = vmatpush.bf16.msra.mxu0 %v430
    %450 = vmatpush.bf16.msra.mxu0 %v429
    %451 = vmatpush.bf16.msra.mxu0 %v428
    %452 = vmatmul.bf16.gmra.mxu0 %v377
    %v453 = vpop.f32.mrf.mxu0
    %v454 = vadd.f32 %v395, %v453
    %v455 = vpop.f32.mrf.mxu0
    %456 = vdwg.mxu0
    %v457 = vmax.f32 %v454, 0.0
    %v458 = vpack.c.bf16 %v457, %v457
    %s459 = scalar_lea.vmem [#allocation2], 320
    %v460 = vld [vmem:[%s459] sm:$0xf]
    %v461 = vld [vmem:[%s459 + $0x4] sm:$0xf]
    %v462 = vld [vmem:[%s459 + $0x8] sm:$0xf]
    %v463 = vld [vmem:[%s459 + $0xc] sm:$0xf]
    %v464 = vld [vmem:[%s459 + $0x10] sm:$0xf]
    %v465 = vld [vmem:[%s459 + $0x14] sm:$0xf]
    %v466 = vld [vmem:[%s459 + $0x18] sm:$0xf]
    %v467 = vld [vmem:[%s459 + $0x1c] sm:$0xf]
    %v468 = vld [vmem:[%s459 + $0x20] sm:$0xf]
    %v469 = vld [vmem:[%s459 + $0x24] sm:$0xf]
    %v470 = vld [vmem:[%s459 + $0x28] sm:$0xf]
    %v471 = vld [vmem:[%s459 + $0x2c] sm:$0xf]
    %v472 = vld [vmem:[%s459 + $0x30] sm:$0xf]
    %v473 = vld [vmem:[%s459 + $0x34] sm:$0xf]
    %v474 = vld [vmem:[%s459 + $0x38] sm:$0xf]
    %v475 = vld [vmem:[%s459 + $0x3c] sm:$0xf]
    %v476 = vperm.slane %v35, 6
    %v493 = vunpack.c.l.b16 %v460
    %v494 = vunpack.c.l.b16 %v461
    %v495 = vunpack.c.l.b16 %v462
    %v496 = vunpack.c.l.b16 %v463
    %v497 = vunpack.c.l.b16 %v464
    %v498 = vunpack.c.l.b16 %v465
    %v499 = vunpack.c.l.b16 %v466
    %v500 = vunpack.c.l.b16 %v467
    %v501 = vunpack.c.l.b16 %v468
    %v502 = vunpack.c.l.b16 %v469
    %v503 = vunpack.c.l.b16 %v470
    %v504 = vunpack.c.l.b16 %v471
    %v505 = vunpack.c.l.b16 %v472
    %v506 = vunpack.c.l.b16 %v473
    %v507 = vunpack.c.l.b16 %v474
    %v508 = vunpack.c.l.b16 %v475
    %v509 = vpack.c.b16 %v494, %v493
    %v510 = vpack.c.b16 %v496, %v495
    %v511 = vpack.c.b16 %v498, %v497
    %v512 = vpack.c.b16 %v500, %v499
    %v513 = vpack.c.b16 %v502, %v501
    %v514 = vpack.c.b16 %v504, %v503
    %v515 = vpack.c.b16 %v506, %v505
    %v516 = vpack.c.b16 %v508, %v507
    %525 = vmatpush.bf16.msra.mxu0 %v516
    %526 = vmatpush.bf16.msra.mxu0 %v515
    %527 = vmatpush.bf16.msra.mxu0 %v514
    %528 = vmatpush.bf16.msra.mxu0 %v513
    %529 = vmatpush.bf16.msra.mxu0 %v512
    %530 = vmatpush.bf16.msra.mxu0 %v511
    %531 = vmatpush.bf16.msra.mxu0 %v510
    %532 = vmatpush.bf16.msra.mxu0 %v509
    %533 = vmatmul.bf16.gmra.mxu0 %v458
    %v534 = vpop.f32.mrf.mxu0
    %v535 = vadd.f32 %v476, %v534
    %v536 = vpop.f32.mrf.mxu0
    %537 = vdwg.mxu0
    %v538 = vmax.f32 %v535, 0.0
    %v539 = vpack.c.bf16 %v538, %v538
    %s540 = scalar_lea.vmem [#allocation2], 384
    %v541 = vld [vmem:[%s540] sm:$0xf]
    %v542 = vld [vmem:[%s540 + $0x4] sm:$0xf]
    %v543 = vld [vmem:[%s540 + $0x8] sm:$0xf]
    %v544 = vld [vmem:[%s540 + $0xc] sm:$0xf]
    %v545 = vld [vmem:[%s540 + $0x10] sm:$0xf]
    %v546 = vld [vmem:[%s540 + $0x14] sm:$0xf]
    %v547 = vld [vmem:[%s540 + $0x18] sm:$0xf]
    %v548 = vld [vmem:[%s540 + $0x1c] sm:$0xf]
    %v549 = vld [vmem:[%s540 + $0x20] sm:$0xf]
    %v550 = vld [vmem:[%s540 + $0x24] sm:$0xf]
    %v551 = vld [vmem:[%s540 + $0x28] sm:$0xf]
    %v552 = vld [vmem:[%s540 + $0x2c] sm:$0xf]
    %v553 = vld [vmem:[%s540 + $0x30] sm:$0xf]
    %v554 = vld [vmem:[%s540 + $0x34] sm:$0xf]
    %v555 = vld [vmem:[%s540 + $0x38] sm:$0xf]
    %v556 = vld [vmem:[%s540 + $0x3c] sm:$0xf]
    %v557 = vperm.slane %v35, 7
    %v574 = vunpack.c.l.b16 %v541
    %v575 = vunpack.c.l.b16 %v542
    %v576 = vunpack.c.l.b16 %v543
    %v577 = vunpack.c.l.b16 %v544
    %v578 = vunpack.c.l.b16 %v545
    %v579 = vunpack.c.l.b16 %v546
    %v580 = vunpack.c.l.b16 %v547
    %v581 = vunpack.c.l.b16 %v548
    %v582 = vunpack.c.l.b16 %v549
    %v583 = vunpack.c.l.b16 %v550
    %v584 = vunpack.c.l.b16 %v551
    %v585 = vunpack.c.l.b16 %v552
    %v586 = vunpack.c.l.b16 %v553
    %v587 = vunpack.c.l.b16 %v554
    %v588 = vunpack.c.l.b16 %v555
    %v589 = vunpack.c.l.b16 %v556
    %v590 = vpack.c.b16 %v575, %v574
    %v591 = vpack.c.b16 %v577, %v576
    %v592 = vpack.c.b16 %v579, %v578
    %v593 = vpack.c.b16 %v581, %v580
    %v594 = vpack.c.b16 %v583, %v582
    %v595 = vpack.c.b16 %v585, %v584
    %v596 = vpack.c.b16 %v587, %v586
    %v597 = vpack.c.b16 %v589, %v588
    %606 = vmatpush.bf16.msra.mxu0 %v597
    %607 = vmatpush.bf16.msra.mxu0 %v596
    %608 = vmatpush.bf16.msra.mxu0 %v595
    %609 = vmatpush.bf16.msra.mxu0 %v594
    %610 = vmatpush.bf16.msra.mxu0 %v593
    %611 = vmatpush.bf16.msra.mxu0 %v592
    %612 = vmatpush.bf16.msra.mxu0 %v591
    %613 = vmatpush.bf16.msra.mxu0 %v590
    %614 = vmatmul.bf16.gmra.mxu0 %v539
    %v615 = vpop.f32.mrf.mxu0
    %v616 = vadd.f32 %v557, %v615
    %v617 = vpop.f32.mrf.mxu0
    %618 = vdwg.mxu0
    %v619 = vadd.f32 %v293, %v616
    %620 = vst [vmem:[#allocation5] sm:$0xff] %v619
    // Predicated region
    $region22: #{tpu_custom_call.1} parent=1 // pred_check
      _
    $region23: #{tpu_custom_call.1} parent=1 // pred_check_branch
      %622 = sbr.rel (0) target = $region25
    $region24: #{tpu_custom_call.1} parent=1 // pred_region
      %624 = vsyncadd [#allocation4], 0
      %s626 = sshll.u32 [#allocation5], 4
      %s627 = int_to_ptr.vmem [resolvable:$true] %s626
      %s628 = sshll.u32 %s4, 4
      %s629 = int_to_ptr.hbm [resolvable:$true] %s628
      %631 = dma.vmem_to_hbm [thread:$0]  %s627, 128, %s629, [#allocation4]
    $region25: #{tpu_custom_call.1} parent=1 // pred_fallthru
      _
    // Predicated region
    $region26: #{tpu_custom_call.1} parent=1 // pred_check
      _
    $region27: #{tpu_custom_call.1} parent=1 // pred_check_branch
      %633 = sbr.rel (0) target = $region29
    $region28: #{tpu_custom_call.1} parent=1 // pred_region
      %635 = dma.done [#allocation4], 128
    $region29: #{tpu_custom_call.1} parent=1 // pred_fallthru
      _
    %636 = vsyncpa [#allocation3], 1
    %637 = vsyncpa [#allocation4], 1

</llo_original>
